<compile_context>
chip_gen: v5e
topology: v5e:2x2
jax: 0.10.0
libtpu: 0.0.40
codegen_flags: <defaults>
</compile_context>

<pallas_src>
import functools

import jax
import jax.numpy as jnp
from jax.experimental import pallas as pl
from jax.experimental.pallas import tpu as pltpu

LANE = 128            # lane-dense padding granularity (features and node count)
_FUSED_MAX_N = 1024   # padded node count up to which a layer runs as ONE fused kernel


def _rup(x, m):
    return ((x + m - 1) // m) * m


def _pad2(a, rows, cols):
    return jnp.pad(a, ((0, rows - a.shape[0]), (0, cols - a.shape[1])))


@functools.lru_cache(maxsize=None)
def _vmem_limit_bytes():
    # Generation-aware VMEM budget: ~3/4 of physical (96 MiB on 128 MiB v5e/v6e,
    # 48 MiB on 64 MiB v7x); conservative fallback if the query is unavailable.
    try:
        cap = int(pltpu.get_tpu_info().vmem_capacity_bytes)
    except Exception:
        cap = 64 * 1024 * 1024
    return max(32 * 1024 * 1024, min(3 * cap // 4, 100 * 1024 * 1024))


def _tiled_sizes(n):
    # Large-graph fallback only (n_p > _FUSED_MAX_N): larger tiles cut per-step overhead
    # while keeping >= 4 row tiles for megacore load balance.
    tk = 1024 if n >= 4 * 1024 else 512
    tm = 512 if tk == 1024 else 256
    return tm, tk, _rup(n, tk)


# ----------------------------------------------------------------------------- graph glue (XLA)

def _gcn_edges(edge_index, edge_weight, n, fill):
    """PyG gcn_norm edge preprocessing with add_remaining_self_loops semantics.
    Returns (src, dst, weights-for-non-self-loop-edges, per-node self-loop weights)."""
    src, dst = edge_index[0], edge_index[1]
    ew = (jnp.ones(src.shape, jnp.float32) if edge_weight is None
          else edge_weight.astype(jnp.float32))
    is_loop = src == dst
    w_ns = jnp.where(is_loop, 0.0, ew)                 # existing self-loop edges removed
    loop_w = jnp.full((n,), fill, jnp.float32)         # missing self-loops get `fill`
    loop_w = loop_w.at[jnp.where(is_loop, src, n)].set(ew, mode="drop")  # keep existing weight
    return src, dst, w_ns, loop_w


def _gcn_dense_graph(edge_index, edge_weight, n, n_p, fill):
    """Dense bf16 adjacency A-hat (built directly in bf16, never materialized in f32)
    and the f32 D^{-1/2} column (zero on padded rows)."""
    src, dst, w_ns, loop_w = _gcn_edges(edge_index, edge_weight, n, fill)
    a = jnp.zeros((n_p, n_p), jnp.bfloat16).at[dst, src].add(w_ns.astype(jnp.bfloat16))
    diag = jnp.arange(n)
    a = a.at[diag, diag].add(loop_w.astype(jnp.bfloat16))
    deg = jnp.zeros((n_p,), jnp.float32).at[dst].add(w_ns).at[:n].add(loop_w)
    dinv = jnp.where(deg > 0.0, jax.lax.rsqrt(deg), 0.0)[:, None]      # (n_p, 1)
    return a, dinv


def _gin_dense_adj(edge_index, n_p):
    src, dst = edge_index[0], edge_index[1]
    return jnp.zeros((n_p, n_p), jnp.bfloat16).at[dst, src].add(
        jnp.ones(src.shape, jnp.bfloat16))


# ----------------------------------------------------------------------------- fused kernels (n_p <= 1024)

def _gin_fused_kernel(a_ref, x_ref, w1_ref, b1_ref, w2_ref, b2_ref,
                      gamma_ref, beta_ref, o_ref, *, n_valid, inv_n, eps):
    x = x_ref[...]                                                   # f32 (n_p, cin_p)
    # GINConv (eps = 0): agg = x + A @ x  (bf16 MXU operands, f32 accumulate, f32 addend)
    agg = x + jnp.dot(a_ref[...], x.astype(jnp.bfloat16),
                      preferred_element_type=jnp.float32)
    # MLP: Linear -> ReLU -> Linear, with the outer GINLayer ReLU folded in (kept f32:
    # it feeds a tiny-batch BatchNorm whose statistics would amplify bf16 rounding).
    h = jnp.dot(agg, w1_ref[...], preferred_element_type=jnp.float32) + b1_ref[...]
    h = jnp.maximum(h, 0.0)
    h = jnp.dot(h, w2_ref[...], preferred_element_type=jnp.float32) + b2_ref[...]
    h = jnp.maximum(h, 0.0)
    # Training-mode BatchNorm1d with statistics over the n_valid real rows only.
    rows = jax.lax.broadcasted_iota(jnp.int32, h.shape, 0)
    mask = (rows < n_valid).astype(jnp.float32)
    mean = jnp.sum(h * mask, axis=0, keepdims=True) * inv_n
    d = (h - mean) * mask
    var = jnp.sum(d * d, axis=0, keepdims=True) * inv_n
    o_ref[...] = ((h - mean) * jax.lax.rsqrt(var + eps) * gamma_ref[...]
                  + beta_ref[...]).astype(o_ref.dtype)


def _gin_layer_fused(x, edge_index, p, n, cin, cout):
    n_p = _rup(n, LANE)
    cin_p, cout_p = _rup(cin, LANE), _rup(cout, LANE)

    a = _gin_dense_adj(edge_index, n_p)
    x_p = _pad2(x.astype(jnp.float32), n_p, cin_p)
    w1 = _pad2(p["w1"].astype(jnp.float32), cin_p, cout_p)
    b1 = _pad2(p["b1"].astype(jnp.float32)[None, :], 1, cout_p)
    w2 = _pad2(p["w2"].astype(jnp.float32), cout_p, cout_p)
    b2 = _pad2(p["b2"].astype(jnp.float32)[None, :], 1, cout_p)
    gamma = _pad2(p["gamma"].astype(jnp.float32)[None, :], 1, cout_p)
    beta = _pad2(p["beta"].astype(jnp.float32)[None, :], 1, cout_p)

    out = pl.pallas_call(
        functools.partial(_gin_fused_kernel, n_valid=n, inv_n=1.0 / n, eps=1e-5),
        out_shape=jax.ShapeDtypeStruct((n_p, cout_p), jnp.float32),
        grid_spec=pltpu.PrefetchScalarGridSpec(
            num_scalar_prefetch=0,
            grid=(1,),
            in_specs=[
                pl.BlockSpec((n_p, n_p), lambda i: (0, 0)),
                pl.BlockSpec((n_p, cin_p), lambda i: (0, 0)),
                pl.BlockSpec((cin_p, cout_p), lambda i: (0, 0)),
                pl.BlockSpec((1, cout_p), lambda i: (0, 0)),
                pl.BlockSpec((cout_p, cout_p), lambda i: (0, 0)),
                pl.BlockSpec((1, cout_p), lambda i: (0, 0)),
                pl.BlockSpec((1, cout_p), lambda i: (0, 0)),
                pl.BlockSpec((1, cout_p), lambda i: (0, 0)),
            ],
            out_specs=pl.BlockSpec((n_p, cout_p), lambda i: (0, 0)),
        ),
        compiler_params=pltpu.CompilerParams(
            dimension_semantics=("arbitrary",),
            vmem_limit_bytes=_vmem_limit_bytes(),
        ),
    )(a, x_p, w1, b1, w2, b2, gamma, beta)
    return out[:n, :cout]


def _gcn_fused_kernel(a_ref, x_ref, w_ref, b_ref, dinv_ref, o_ref, *, apply_relu):
    dinv = dinv_ref[...]
    # y = dinv * (X @ W)  (bf16 MXU operands, f32 accumulation)
    y = jnp.dot(x_ref[...].astype(jnp.bfloat16), w_ref[...],
                preferred_element_type=jnp.float32) * dinv
    # out = dinv * (A @ y) + b ; the normalized [N,N] adjacency is never built.
    out = jnp.dot(a_ref[...], y.astype(jnp.bfloat16),
                  preferred_element_type=jnp.float32) * dinv + b_ref[...]
    if apply_relu:
        out = jnp.maximum(out, 0.0)
    o_ref[...] = out.astype(o_ref.dtype)


def _gcn_conv_fused(x, edge_index, edge_weight, w, b, n, cin, cout, fill, apply_relu):
    n_p = _rup(n, LANE)
    cin_p, cout_p = _rup(cin, LANE), _rup(cout, LANE)

    a, dinv = _gcn_dense_graph(edge_index, edge_weight, n, n_p, fill)
    x_p = _pad2(x.astype(jnp.float32), n_p, cin_p)
    w_p = _pad2(w.astype(jnp.float32), cin_p, cout_p).astype(jnp.bfloat16)
    b_p = _pad2(b.astype(jnp.float32)[None, :], 1, cout_p)

    out = pl.pallas_call(
        functools.partial(_gcn_fused_kernel, apply_relu=apply_relu),
        out_shape=jax.ShapeDtypeStruct((n_p, cout_p), jnp.float32),
        grid_spec=pltpu.PrefetchScalarGridSpec(
            num_scalar_prefetch=0,
            grid=(1,),
            in_specs=[
                pl.BlockSpec((n_p, n_p), lambda i: (0, 0)),
                pl.BlockSpec((n_p, cin_p), lambda i: (0, 0)),
                pl.BlockSpec((cin_p, cout_p), lambda i: (0, 0)),
                pl.BlockSpec((1, cout_p), lambda i: (0, 0)),
                pl.BlockSpec((n_p, 1), lambda i: (0, 0)),
            ],
            out_specs=pl.BlockSpec((n_p, cout_p), lambda i: (0, 0)),
        ),
        compiler_params=pltpu.CompilerParams(
            dimension_semantics=("arbitrary",),
            vmem_limit_bytes=_vmem_limit_bytes(),
        ),
    )(a, x_p, w_p, b_p, dinv)
    return out[:n, :cout]


# ----------------------------------------------------------------------------- tiled fallback (large graphs)

def _linear_kernel(x_ref, w_ref, b_ref, s_ref, o_ref, *, apply_relu):
    # out = act((X @ W) * row_scale + bias)
    r = jnp.dot(x_ref[...], w_ref[...], preferred_element_type=jnp.float32)
    r = r * s_ref[...] + b_ref[...]
    if apply_relu:
        r = jnp.maximum(r, 0.0)
    o_ref[...] = r.astype(o_ref.dtype)


def _linear(x, w, b, row_scale, *, apply_relu, out_dtype, tm):
    n_p, k_p = x.shape
    c_p = w.shape[1]
    return pl.pallas_call(
        functools.partial(_linear_kernel, apply_relu=apply_relu),
        out_shape=jax.ShapeDtypeStruct((n_p, c_p), out_dtype),
        grid_spec=pltpu.PrefetchScalarGridSpec(
            num_scalar_prefetch=0,
            grid=(n_p // tm,),
            in_specs=[
                pl.BlockSpec((tm, k_p), lambda i: (i, 0)),
                pl.BlockSpec((k_p, c_p), lambda i: (0, 0)),
                pl.BlockSpec((1, c_p), lambda i: (0, 0)),
                pl.BlockSpec((tm, 1), lambda i: (i, 0)),
            ],
            out_specs=pl.BlockSpec((tm, c_p), lambda i: (i, 0)),
        ),
        compiler_params=pltpu.CompilerParams(
            dimension_semantics=("parallel",),
            vmem_limit_bytes=_vmem_limit_bytes(),
        ),
    )(x, w, b, row_scale)


def _aggregate_kernel(a_ref, y_ref, s_ref, add_ref, o_ref, *, apply_relu):
    # out = act(row_scale * (A @ Y) + addend); partial products accumulate directly into
    # the resident f32 output block (no VMEM scratch, no extra finalize copy).
    k = pl.program_id(1)

    @pl.when(k == 0)
    def _():
        o_ref[...] = jnp.zeros_like(o_ref)

    o_ref[...] += jnp.dot(a_ref[...], y_ref[...], preferred_element_type=jnp.float32)

    @pl.when(k == pl.num_programs(1) - 1)
    def _():
        r = o_ref[...] * s_ref[...] + add_ref[...]
        if apply_relu:
            r = jnp.maximum(r, 0.0)
        o_ref[...] = r


def _aggregate(a, y, row_scale, addend, *, apply_relu, tm, tk):
    n_p = a.shape[0]
    c_p = y.shape[1]
    if addend.shape[0] == 1:                         # broadcast bias row
        add_spec = pl.BlockSpec((1, c_p), lambda i, k: (0, 0))
    else:                                            # per-node residual term
        add_spec = pl.BlockSpec((tm, c_p), lambda i, k: (i, 0))
    return pl.pallas_call(
        functools.partial(_aggregate_kernel, apply_relu=apply_relu),
        out_shape=jax.ShapeDtypeStruct((n_p, c_p), jnp.float32),
        grid_spec=pltpu.PrefetchScalarGridSpec(
            num_scalar_prefetch=0,
            grid=(n_p // tm, n_p // tk),             # reduction (source-node) axis last
            in_specs=[
                pl.BlockSpec((tm, tk), lambda i, k: (i, k)),
                pl.BlockSpec((tk, c_p), lambda i, k: (k, 0)),
                pl.BlockSpec((tm, 1), lambda i, k: (i, 0)),
                add_spec,
            ],
            out_specs=pl.BlockSpec((tm, c_p), lambda i, k: (i, 0)),
        ),
        compiler_params=pltpu.CompilerParams(
            dimension_semantics=("parallel", "arbitrary"),
            vmem_limit_bytes=_vmem_limit_bytes(),
        ),
    )(a, y, row_scale, addend)


def _batchnorm_kernel(x_ref, g_ref, b_ref, o_ref, *, eps, inv_n):
    x = x_ref[...]
    mean = jnp.sum(x, axis=0, keepdims=True) * inv_n
    d = x - mean
    var = jnp.sum(d * d, axis=0, keepdims=True) * inv_n
    o_ref[...] = (d * jax.lax.rsqrt(var + eps) * g_ref[...] + b_ref[...]).astype(o_ref.dtype)


def _batchnorm(x, gamma, beta, *, eps=1e-5):
    # Training-mode BatchNorm1d (fresh nn.Module default): batch statistics over nodes.
    # TODO(synk): single-block statistics; for very large N tile into a two-pass reduction.
    n, c_p = x.shape
    return pl.pallas_call(
        functools.partial(_batchnorm_kernel, eps=eps, inv_n=1.0 / n),
        out_shape=jax.ShapeDtypeStruct((n, c_p), jnp.float32),
        grid_spec=pltpu.PrefetchScalarGridSpec(
            num_scalar_prefetch=0,
            grid=(1,),
            in_specs=[
                pl.BlockSpec((n, c_p), lambda i: (0, 0)),
                pl.BlockSpec((1, c_p), lambda i: (0, 0)),
                pl.BlockSpec((1, c_p), lambda i: (0, 0)),
            ],
            out_specs=pl.BlockSpec((n, c_p), lambda i: (0, 0)),
        ),
        compiler_params=pltpu.CompilerParams(dimension_semantics=("arbitrary",)),
    )(x, gamma, beta)


def _gin_layer_tiled(x, edge_index, p, n, cin, cout):
    # TODO(synk): beyond ~8-16K nodes replace the dense O(N^2) adjacency with a
    # CSR + scalar-prefetch gather formulation.
    tm, tk, n_p = _tiled_sizes(n)
    cin_p, cout_p = _rup(cin, LANE), _rup(cout, LANE)

    a = _gin_dense_adj(edge_index, n_p)
    x_p = _pad2(x.astype(jnp.float32), n_p, cin_p)
    ones = jnp.ones((n_p, 1), jnp.float32)

    # GINConv (eps = 0): agg = x + A @ x  (bf16 MXU operands, f32 accumulator/addend).
    agg = _aggregate(a, x_p.astype(jnp.bfloat16), ones, x_p,
                     apply_relu=False, tm=tm, tk=tk)

    w1 = _pad2(p["w1"].astype(jnp.float32), cin_p, cout_p)
    b1 = _pad2(p["b1"].astype(jnp.float32)[None, :], 1, cout_p)
    w2 = _pad2(p["w2"].astype(jnp.float32), cout_p, cout_p)
    b2 = _pad2(p["b2"].astype(jnp.float32)[None, :], 1, cout_p)
    h = _linear(agg, w1, b1, ones, apply_relu=True, out_dtype=jnp.float32, tm=tm)
    h = _linear(h, w2, b2, ones, apply_relu=True, out_dtype=jnp.float32, tm=tm)

    gamma = _pad2(p["gamma"].astype(jnp.float32)[None, :], 1, cout_p)
    beta = _pad2(p["beta"].astype(jnp.float32)[None, :], 1, cout_p)
    h = _batchnorm(h[:n], gamma, beta)
    return h[:, :cout]


def _gcn_conv_tiled(x, edge_index, edge_weight, w, b, n, cin, cout, fill, apply_relu):
    tm, tk, n_p = _tiled_sizes(n)
    cin_p, cout_p = _rup(cin, LANE), _rup(cout, LANE)

    a, dinv = _gcn_dense_graph(edge_index, edge_weight, n, n_p, fill)
    x_p = _pad2(x.astype(jnp.float32), n_p, cin_p).astype(jnp.bfloat16)
    w_p = _pad2(w.astype(jnp.float32), cin_p, cout_p).astype(jnp.bfloat16)
    b_p = _pad2(b.astype(jnp.float32)[None, :], 1, cout_p)
    zero_bias = jnp.zeros((1, cout_p), jnp.float32)

    # Y = dinv * (X @ W), emitted directly as bf16 for the aggregation pass.
    y = _linear(x_p, w_p, zero_bias, dinv, apply_relu=False,
                out_dtype=jnp.bfloat16, tm=tm)
    out = _aggregate(a, y, dinv, b_p, apply_relu=apply_relu, tm=tm, tk=tk)
    return out[:n, :cout]


# ----------------------------------------------------------------------------- layers

def gin_layer_forward(x, edge_index, p):
    """GINLayer: ReLU(GINConv(Linear->ReLU->Linear)(x, A)) followed by BatchNorm1d."""
    n, cin = x.shape
    cout = p["w1"].shape[1]
    if _rup(n, LANE) <= _FUSED_MAX_N:
        return _gin_layer_fused(x, edge_index, p, n, cin, cout)
    return _gin_layer_tiled(x, edge_index, p, n, cin, cout)


def gcn_conv_forward(x, edge_index, edge_weight, w, b, *, improved, apply_relu):
    """torch_geometric GCNConv (add_self_loops=True, normalize=True, bias=True)."""
    n, cin = x.shape
    cout = w.shape[1]
    fill = 2.0 if improved else 1.0
    if _rup(n, LANE) <= _FUSED_MAX_N:
        return _gcn_conv_fused(x, edge_index, edge_weight, w, b,
                               n, cin, cout, fill, apply_relu)
    return _gcn_conv_tiled(x, edge_index, edge_weight, w, b,
                           n, cin, cout, fill, apply_relu)


def variational_graph_decoder_forward(params, x, edge_index, xs, edge_indices,
                                      edge_weights, perms):
    # projection convs (use_gin=True -> GINLayer)
    x = gin_layer_forward(x, edge_index, params["proj1"])
    x = gin_layer_forward(x, edge_index, params["proj2"])
    # up-sampling path
    depth = len(params["up"])
    for i in range(depth):
        j = depth - 1 - i
        # TODO(synk): the un-pooling scatter (up[perm] = x) and the dense-adjacency build
        # stay in XLA glue; beyond ~8-16K nodes a CSR + scalar-prefetch gather kernel
        # should replace the dense adjacency path.
        up = jnp.zeros_like(xs[j]).at[perms[j]].set(x)
        w, b = params["up"][i]
        x = gcn_conv_forward(up, edge_indices[j], edge_weights[j], w, b,
                             improved=True, apply_relu=(i < depth - 1))
    return x


# ----------------------------------------------------------------------------- reference (pure XLA, f32)

def _decoder_ref(params, x, edge_index, xs, edge_indices, edge_weights, perms):
    def gin(x, ei, p):
        n = x.shape[0]
        a = jnp.zeros((n, n), jnp.float32).at[ei[1], ei[0]].add(1.0)
        agg = x + a @ x
        h = jnp.maximum(agg @ p["w1"] + p["b1"][None, :], 0.0)
        h = jnp.maximum(h @ p["w2"] + p["b2"][None, :], 0.0)
        mean = jnp.mean(h, axis=0, keepdims=True)
        var = jnp.mean((h - mean) ** 2, axis=0, keepdims=True)
        return p["gamma"][None, :] * (h - mean) / jnp.sqrt(var + 1e-5) + p["beta"][None, :]

    def gcn(x, ei, ew, w, b, improved, relu_):
        n = x.shape[0]
        fill = 2.0 if improved else 1.0
        src, dst, w_ns, loop_w = _gcn_edges(ei, ew, n, fill)
        a = jnp.zeros((n, n), jnp.float32).at[dst, src].add(w_ns)
        a = a + jnp.diag(loop_w)
        deg = a.sum(axis=1, keepdims=True)
        dinv = jnp.where(deg > 0, 1.0 / jnp.sqrt(deg), 0.0)
        out = dinv * (a @ (dinv * (x @ w))) + b[None, :]
        return jnp.maximum(out, 0.0) if relu_ else out

    x = gin(x, edge_index, params["proj1"])
    x = gin(x, edge_index, params["proj2"])
    d = len(params["up"])
    for i in range(d):
        j = d - 1 - i
        up = jnp.zeros_like(xs[j]).at[perms[j]].set(x)
        w, b = params["up"][i]
        x = gcn(up, edge_indices[j], edge_weights[j], w, b, True, i < d - 1)
    return x


# ----------------------------------------------------------------------------- test

if __name__ == "__main__":
    key = jax.random.PRNGKey(0)
    ks = jax.random.split(key, 20)

    depth = 2
    in_channels, hidden_channels, out_channels = 6, 10, 7
    n_levels = [16, 8, 4]            # node counts at levels 0 (finest) .. 2 (coarsest)
    h2 = hidden_channels // 2

    def ring_plus_random(k, n, extra):
        s = jnp.arange(n, dtype=jnp.int32)
        d = (s + 1) % n
        e = jax.random.randint(k, (2, extra), 0, n, dtype=jnp.int32)
        return jnp.concatenate([jnp.stack([s, d]), e], axis=1)

    # coarsest-level latent node embeddings + coarsest-level graph
    x = jax.random.normal(ks[0], (n_levels[2], in_channels), jnp.float32)
    edge_index = ring_plus_random(ks[1], n_levels[2], 4)

    # per-level residual shapes, graphs, edge weights, and un-pooling permutations
    edge_indices = [ring_plus_random(ks[2], n_levels[0], 12),
                    ring_plus_random(ks[3], n_levels[1], 6)]
    edge_weights = [jax.random.uniform(ks[4], (edge_indices[0].shape[1],), jnp.float32, 0.5, 1.5),
                    jax.random.uniform(ks[5], (edge_indices[1].shape[1],), jnp.float32, 0.5, 1.5)]
    xs = [jax.random.normal(ks[6], (n_levels[0], hidden_channels), jnp.float32),
          jax.random.normal(ks[7], (n_levels[1], hidden_channels), jnp.float32)]
    perms = [jax.random.permutation(ks[8], n_levels[0])[:n_levels[1]].astype(jnp.int32),
             jax.random.permutation(ks[9], n_levels[1])[:n_levels[2]].astype(jnp.int32)]

    def glorot(k, cin, cout):
        lim = (6.0 / (cin + cout)) ** 0.5
        return jax.random.uniform(k, (cin, cout), jnp.float32, -lim, lim)

    params = {
        "proj1": {"w1": glorot(ks[10], in_channels, h2),
                  "b1": 0.1 * jax.random.normal(ks[11], (h2,), jnp.float32),
                  "w2": glorot(ks[12], h2, h2),
                  "b2": 0.1 * jax.random.normal(ks[13], (h2,), jnp.float32),
                  "gamma": jnp.ones((h2,), jnp.float32),
                  "beta": jnp.zeros((h2,), jnp.float32)},
        "proj2": {"w1": glorot(ks[14], h2, hidden_channels),
                  "b1": 0.1 * jax.random.normal(ks[15], (hidden_channels,), jnp.float32),
                  "w2": glorot(ks[16], hidden_channels, hidden_channels),
                  "b2": 0.1 * jax.random.normal(ks[17], (hidden_channels,), jnp.float32),
                  "gamma": jnp.ones((hidden_channels,), jnp.float32),
                  "beta": jnp.zeros((hidden_channels,), jnp.float32)},
        "up": [(glorot(ks[18], hidden_channels, hidden_channels),
                jnp.zeros((hidden_channels,), jnp.float32)),
               (glorot(ks[19], hidden_channels, out_channels),
                jnp.zeros((out_channels,), jnp.float32))],
    }

    out = variational_graph_decoder_forward(
        params, x, edge_index, xs, edge_indices, edge_weights, perms)
    out = jax.block_until_ready(out)

    ref = _decoder_ref(params, x, edge_index, xs, edge_indices, edge_weights, perms)

    assert out.shape == (n_levels[0], out_channels)
    # tolerance relaxed for the bf16 MXU paths (f32 accumulation)
    max_err = float(jnp.max(jnp.abs(out - ref)))
    assert jnp.allclose(out, ref, atol=5e-2, rtol=5e-2), f"max abs err {max_err}"

    print("KERNEL_OK")
</pallas_src>

<mosaic_0001>
module attributes {stable_mosaic.version = 11 : i64} {
  func.func @_gin_fused_kernel(%arg0: i32, %arg1: memref<128x128xbf16, #tpu.memory_space<vmem>>, %arg2: memref<128x128xf32, #tpu.memory_space<vmem>>, %arg3: memref<128x128xf32, #tpu.memory_space<vmem>>, %arg4: memref<1x128xf32, #tpu.memory_space<vmem>>, %arg5: memref<128x128xf32, #tpu.memory_space<vmem>>, %arg6: memref<1x128xf32, #tpu.memory_space<vmem>>, %arg7: memref<1x128xf32, #tpu.memory_space<vmem>>, %arg8: memref<1x128xf32, #tpu.memory_space<vmem>>, %arg9: memref<128x128xf32, #tpu.memory_space<vmem>>) attributes {dimension_semantics = [#tpu.dimension_semantics<arbitrary>], iteration_bounds = array<i64: 1>, scalar_prefetch = 0 : i64, scratch_operands = 0 : i64, tpu.core_type = #tpu.core_type<tc>, window_params = [{pipeline_mode = #tpu.pipeline_mode<synchronous>, transform_indices = @transform_0, window_bounds = array<i64: 128, 128>}, {pipeline_mode = #tpu.pipeline_mode<synchronous>, transform_indices = @transform_1, window_bounds = array<i64: 128, 128>}, {pipeline_mode = #tpu.pipeline_mode<synchronous>, transform_indices = @transform_2, window_bounds = array<i64: 128, 128>}, {pipeline_mode = #tpu.pipeline_mode<synchronous>, transform_indices = @transform_3, window_bounds = array<i64: 1, 128>}, {pipeline_mode = #tpu.pipeline_mode<synchronous>, transform_indices = @transform_4, window_bounds = array<i64: 128, 128>}, {pipeline_mode = #tpu.pipeline_mode<synchronous>, transform_indices = @transform_5, window_bounds = array<i64: 1, 128>}, {pipeline_mode = #tpu.pipeline_mode<synchronous>, transform_indices = @transform_6, window_bounds = array<i64: 1, 128>}, {pipeline_mode = #tpu.pipeline_mode<synchronous>, transform_indices = @transform_7, window_bounds = array<i64: 1, 128>}, {pipeline_mode = #tpu.pipeline_mode<synchronous>, transform_indices = @transform_8, window_bounds = array<i64: 128, 128>}]} {
    %c0 = arith.constant 0 : index
    %c0_0 = arith.constant 0 : index
    %0 = vector.load %arg2[%c0, %c0_0] : memref<128x128xf32, #tpu.memory_space<vmem>>, vector<128x128xf32>
    %c0_1 = arith.constant 0 : index
    %c0_2 = arith.constant 0 : index
    %1 = vector.load %arg1[%c0_1, %c0_2] : memref<128x128xbf16, #tpu.memory_space<vmem>>, vector<128x128xbf16>
    %2 = arith.truncf %0 : vector<128x128xf32> to vector<128x128xbf16>
    %cst = arith.constant dense<0.000000e+00> : vector<128x128xf32>
    %3 = tpu.matmul %1, %2, %cst {dimension_numbers = #tpu.dot_dimension_numbers<[1], [0], [0], [1], [0, 0, 1, 1], [], []>} : vector<128x128xbf16>, vector<128x128xbf16>, vector<128x128xf32> -> vector<128x128xf32>
    %4 = arith.addf %0, %3 : vector<128x128xf32>
    %c0_3 = arith.constant 0 : index
    %c0_4 = arith.constant 0 : index
    %5 = vector.load %arg3[%c0_3, %c0_4] : memref<128x128xf32, #tpu.memory_space<vmem>>, vector<128x128xf32>
    %cst_5 = arith.constant dense<0.000000e+00> : vector<128x128xf32>
    %6 = tpu.matmul %4, %5, %cst_5 {dimension_numbers = #tpu.dot_dimension_numbers<[1], [0], [0], [1], [0, 0, 1, 1], [], []>} : vector<128x128xf32>, vector<128x128xf32>, vector<128x128xf32> -> vector<128x128xf32>
    %c0_6 = arith.constant 0 : index
    %c0_7 = arith.constant 0 : index
    %7 = vector.load %arg4[%c0_6, %c0_7] : memref<1x128xf32, #tpu.memory_space<vmem>>, vector<1x128xf32>
    %8 = vector.broadcast %7 : vector<1x128xf32> to vector<128x128xf32>
    %9 = arith.addf %6, %8 : vector<128x128xf32>
    %cst_8 = arith.constant 0.000000e+00 : f32
    %10 = vector.broadcast %cst_8 : f32 to vector<128x128xf32>
    %11 = arith.maximumf %9, %10 : vector<128x128xf32>
    %c0_9 = arith.constant 0 : index
    %c0_10 = arith.constant 0 : index
    %12 = vector.load %arg5[%c0_9, %c0_10] : memref<128x128xf32, #tpu.memory_space<vmem>>, vector<128x128xf32>
    %cst_11 = arith.constant dense<0.000000e+00> : vector<128x128xf32>
    %13 = tpu.matmul %11, %12, %cst_11 {dimension_numbers = #tpu.dot_dimension_numbers<[1], [0], [0], [1], [0, 0, 1, 1], [], []>} : vector<128x128xf32>, vector<128x128xf32>, vector<128x128xf32> -> vector<128x128xf32>
    %c0_12 = arith.constant 0 : index
    %c0_13 = arith.constant 0 : index
    %14 = vector.load %arg6[%c0_12, %c0_13] : memref<1x128xf32, #tpu.memory_space<vmem>>, vector<1x128xf32>
    %15 = vector.broadcast %14 : vector<1x128xf32> to vector<128x128xf32>
    %16 = arith.addf %13, %15 : vector<128x128xf32>
    %cst_14 = arith.constant 0.000000e+00 : f32
    %17 = vector.broadcast %cst_14 : f32 to vector<128x128xf32>
    %18 = arith.maximumf %16, %17 : vector<128x128xf32>
    %19 = tpu.iota {dimensions = array<i32: 0>} : vector<128x128xi32>
    %c4_i32 = arith.constant 4 : i32
    %20 = vector.broadcast %c4_i32 : i32 to vector<128x128xi32>
    %21 = arith.cmpi slt, %19, %20 : vector<128x128xi32>
    %22 = arith.extui %21 : vector<128x128xi1> to vector<128x128xi32>
    %23 = arith.sitofp %22 : vector<128x128xi32> to vector<128x128xf32>
    %24 = arith.mulf %18, %23 : vector<128x128xf32>
    %cst_15 = arith.constant dense<0.000000e+00> : vector<128xf32>
    %25 = vector.multi_reduction <add>, %24, %cst_15 [0] : vector<128x128xf32> to vector<128xf32>
    %26 = vector.shape_cast %25 : vector<128xf32> to vector<1x128xf32>
    %cst_16 = arith.constant 2.500000e-01 : f32
    %27 = vector.broadcast %cst_16 : f32 to vector<1x128xf32>
    %28 = arith.mulf %26, %27 : vector<1x128xf32>
    %29 = vector.broadcast %28 : vector<1x128xf32> to vector<128x128xf32>
    %30 = arith.subf %18, %29 : vector<128x128xf32>
    %31 = arith.mulf %30, %23 : vector<128x128xf32>
    %32 = arith.mulf %31, %31 : vector<128x128xf32>
    %cst_17 = arith.constant dense<0.000000e+00> : vector<128xf32>
    %33 = vector.multi_reduction <add>, %32, %cst_17 [0] : vector<128x128xf32> to vector<128xf32>
    %34 = vector.shape_cast %33 : vector<128xf32> to vector<1x128xf32>
    %cst_18 = arith.constant 2.500000e-01 : f32
    %35 = vector.broadcast %cst_18 : f32 to vector<1x128xf32>
    %36 = arith.mulf %34, %35 : vector<1x128xf32>
    %37 = vector.broadcast %28 : vector<1x128xf32> to vector<128x128xf32>
    %38 = arith.subf %18, %37 : vector<128x128xf32>
    %cst_19 = arith.constant 9.99999974E-6 : f32
    %39 = vector.broadcast %cst_19 : f32 to vector<1x128xf32>
    %40 = arith.addf %36, %39 : vector<1x128xf32>
    %41 = math.rsqrt %40 : vector<1x128xf32>
    %42 = vector.broadcast %41 : vector<1x128xf32> to vector<128x128xf32>
    %43 = arith.mulf %38, %42 : vector<128x128xf32>
    %c0_20 = arith.constant 0 : index
    %c0_21 = arith.constant 0 : index
    %44 = vector.load %arg7[%c0_20, %c0_21] : memref<1x128xf32, #tpu.memory_space<vmem>>, vector<1x128xf32>
    %45 = vector.broadcast %44 : vector<1x128xf32> to vector<128x128xf32>
    %46 = arith.mulf %43, %45 : vector<128x128xf32>
    %c0_22 = arith.constant 0 : index
    %c0_23 = arith.constant 0 : index
    %47 = vector.load %arg8[%c0_22, %c0_23] : memref<1x128xf32, #tpu.memory_space<vmem>>, vector<1x128xf32>
    %48 = vector.broadcast %47 : vector<1x128xf32> to vector<128x128xf32>
    %49 = arith.addf %46, %48 : vector<128x128xf32>
    %c0_24 = arith.constant 0 : index
    %c0_25 = arith.constant 0 : index
    %50 = vector.load %arg9[%c0_24, %c0_25] : memref<128x128xf32, #tpu.memory_space<vmem>>, vector<128x128xf32>
    tpu.vector_store %arg9[%c0_24, %c0_25], %49 {strides = array<i32>} : memref<128x128xf32, #tpu.memory_space<vmem>>, vector<128x128xf32>,
    return
  }
  func.func @transform_0(%arg0: i32) -> (i32, i32) {
    %c0_i32 = arith.constant 0 : i32
    %c0_i32_0 = arith.constant 0 : i32
    %c0_i32_1 = arith.constant 0 : i32
    return %c0_i32, %c0_i32_0 : i32, i32
  }
  func.func @transform_1(%arg0: i32) -> (i32, i32) {
    %c0_i32 = arith.constant 0 : i32
    %c0_i32_0 = arith.constant 0 : i32
    %c0_i32_1 = arith.constant 0 : i32
    return %c0_i32, %c0_i32_0 : i32, i32
  }
  func.func @transform_2(%arg0: i32) -> (i32, i32) {
    %c0_i32 = arith.constant 0 : i32
    %c0_i32_0 = arith.constant 0 : i32
    %c0_i32_1 = arith.constant 0 : i32
    return %c0_i32, %c0_i32_0 : i32, i32
  }
  func.func @transform_3(%arg0: i32) -> (i32, i32) {
    %c0_i32 = arith.constant 0 : i32
    %c0_i32_0 = arith.constant 0 : i32
    %c0_i32_1 = arith.constant 0 : i32
    return %c0_i32, %c0_i32_0 : i32, i32
  }
  func.func @transform_4(%arg0: i32) -> (i32, i32) {
    %c0_i32 = arith.constant 0 : i32
    %c0_i32_0 = arith.constant 0 : i32
    %c0_i32_1 = arith.constant 0 : i32
    return %c0_i32, %c0_i32_0 : i32, i32
  }
  func.func @transform_5(%arg0: i32) -> (i32, i32) {
    %c0_i32 = arith.constant 0 : i32
    %c0_i32_0 = arith.constant 0 : i32
    %c0_i32_1 = arith.constant 0 : i32
    return %c0_i32, %c0_i32_0 : i32, i32
  }
  func.func @transform_6(%arg0: i32) -> (i32, i32) {
    %c0_i32 = arith.constant 0 : i32
    %c0_i32_0 = arith.constant 0 : i32
    %c0_i32_1 = arith.constant 0 : i32
    return %c0_i32, %c0_i32_0 : i32, i32
  }
  func.func @transform_7(%arg0: i32) -> (i32, i32) {
    %c0_i32 = arith.constant 0 : i32
    %c0_i32_0 = arith.constant 0 : i32
    %c0_i32_1 = arith.constant 0 : i32
    return %c0_i32, %c0_i32_0 : i32, i32
  }
  func.func @transform_8(%arg0: i32) -> (i32, i32) {
    %c0_i32 = arith.constant 0 : i32
    %c0_i32_0 = arith.constant 0 : i32
    %c0_i32_1 = arith.constant 0 : i32
    return %c0_i32, %c0_i32_0 : i32, i32
  }
}

</mosaic_0001>

<llo_original>
// kernel: tpu_custom_call.1
$region0: #{tpu_custom_call.1}
  #allocation0 [shape = 'u32[]', space=smem, size = 0x4, offset = 0x4, fixed_abs, tag = 'smem constant byte address 0x4 - core index']
  #allocation1 [shape = 'u32[72,128]{1,0:T(1,128)}', space=vmem, size = 0x9000, scoped, tag = 'internal scratch']
  %s0 = inlined_call_operand.hbm [shape: bf16[128,128], index: 0, kind: input, shape index: {}]
  %s1 = inlined_call_operand.hbm [shape: f32[128,128], index: 1, kind: input, shape index: {}]
  %s2 = inlined_call_operand.hbm [shape: f32[128,128], index: 2, kind: input, shape index: {}]
  %s3 = inlined_call_operand.vmem [shape: f32[1,128], index: 3, kind: input, shape index: {}]
  %s4 = inlined_call_operand.hbm [shape: f32[128,128], index: 4, kind: input, shape index: {}]
  %s5 = inlined_call_operand.vmem [shape: f32[1,128], index: 5, kind: input, shape index: {}]
  %s6 = inlined_call_operand.vmem [shape: f32[1,128], index: 6, kind: input, shape index: {}]
  %s7 = inlined_call_operand.vmem [shape: f32[1,128], index: 7, kind: input, shape index: {}]
  %s8 = inlined_call_operand.hbm [shape: f32[128,128], index: 8, kind: output, shape index: {}]
  %s9 = sld [smem:[#allocation0]]
  $region58: #{tpu_custom_call.1} parent=0
    _
  %s11 = ssub.s32 1, %s9
  %s12 = scalar_select 0, %s11, %s9
  $region1: #{tpu_custom_call.1} parent=0
    #allocation2 [shape = 'u8[32768]{0}', space=vmem, size = 0x8000, scoped, tag = 'input window, operand 0, single buffered']
    #allocation3 [shape = 's32[1]{0}', space=sflag, size = 0x4, scoped, tag = 'scoped memory for tpu_custom_call.1']
    #allocation4 [shape = 's32[1]{0}', space=sflag, size = 0x4, scoped, tag = 'scoped memory for tpu_custom_call.1']
    #allocation5 [shape = 'u8[65536]{0}', space=vmem, size = 0x10000, scoped, tag = 'input window, operand 1, single buffered']
    #allocation6 [shape = 's32[1]{0}', space=sflag, size = 0x4, scoped, tag = 'scoped memory for tpu_custom_call.1']
    #allocation7 [shape = 'u8[65536]{0}', space=vmem, size = 0x10000, scoped, tag = 'input window, operand 2, single buffered']
    #allocation8 [shape = 'u8[65536]{0}', space=vmem, size = 0x10000, scoped, tag = 'input window, operand 4, single buffered']
    #allocation9 [shape = 's32[1]{0}', space=sflag, size = 0x4, scoped, tag = 'scoped memory for tpu_custom_call.1']
    #allocation10 [shape = 'u8[65536]{0}', space=vmem, size = 0x10000, scoped, tag = 'output window, operand 0, single buffered']
    %13 = vsyncpa [#allocation3], 0
    %14 = vsyncpa [#allocation6], 0
    %15 = vsyncpa [#allocation9], 0
    %16 = vsyncpa [#allocation4], 0
    // Predicated region
    $region2: #{tpu_custom_call.1} parent=1 // pred_check
      _
    $region3: #{tpu_custom_call.1} parent=1 // pred_check_branch
      %18 = sbr.rel (0) target = $region5
    $region4: #{tpu_custom_call.1} parent=1 // pred_region
      %20 = vsyncadd [#allocation3], 0
      %s21 = sshll.u32 %s0, 4
      %s22 = int_to_ptr.hbm [resolvable:$true] %s21
      %s23 = sshll.u32 [#allocation2], 4
      %s24 = int_to_ptr.vmem [resolvable:$true] %s23
      %29 = dma.hbm_to_vmem [thread:$0]  %s22, 1024, %s24, [#allocation3], 64, 64, 4
    $region5: #{tpu_custom_call.1} parent=1 // pred_fallthru
      _
    // Predicated region
    $region6: #{tpu_custom_call.1} parent=1 // pred_check
      _
    $region7: #{tpu_custom_call.1} parent=1 // pred_check_branch
      %31 = sbr.rel (0) target = $region9
    $region8: #{tpu_custom_call.1} parent=1 // pred_region
      %33 = vsyncadd [#allocation6], 0
      %s34 = sshll.u32 %s1, 4
      %s35 = int_to_ptr.hbm [resolvable:$true] %s34
      %s36 = sshll.u32 [#allocation5], 4
      %s37 = int_to_ptr.vmem [resolvable:$true] %s36
      %42 = dma.hbm_to_vmem [thread:$0]  %s35, 2048, %s37, [#allocation6], 128, 128, 8
    $region9: #{tpu_custom_call.1} parent=1 // pred_fallthru
      _
    // Predicated region
    $region10: #{tpu_custom_call.1} parent=1 // pred_check
      _
    $region11: #{tpu_custom_call.1} parent=1 // pred_check_branch
      %44 = sbr.rel (0) target = $region13
    $region12: #{tpu_custom_call.1} parent=1 // pred_region
      %46 = vsyncadd [#allocation6], 0
      %s47 = sshll.u32 %s2, 4
      %s48 = int_to_ptr.hbm [resolvable:$true] %s47
      %s49 = sshll.u32 [#allocation7], 4
      %s50 = int_to_ptr.vmem [resolvable:$true] %s49
      %55 = dma.hbm_to_vmem [thread:$0]  %s48, 2048, %s50, [#allocation6], 128, 128, 8
    $region13: #{tpu_custom_call.1} parent=1 // pred_fallthru
      _
    // Predicated region
    $region14: #{tpu_custom_call.1} parent=1 // pred_check
      _
    $region15: #{tpu_custom_call.1} parent=1 // pred_check_branch
      %57 = sbr.rel (0) target = $region17
    $region16: #{tpu_custom_call.1} parent=1 // pred_region
      _
    $region17: #{tpu_custom_call.1} parent=1 // pred_fallthru
      _
    // Predicated region
    $region18: #{tpu_custom_call.1} parent=1 // pred_check
      _
    $region19: #{tpu_custom_call.1} parent=1 // pred_check_branch
      %59 = sbr.rel (0) target = $region21
    $region20: #{tpu_custom_call.1} parent=1 // pred_region
      %61 = vsyncadd [#allocation9], 0
      %s62 = sshll.u32 %s4, 4
      %s63 = int_to_ptr.hbm [resolvable:$true] %s62
      %s64 = sshll.u32 [#allocation8], 4
      %s65 = int_to_ptr.vmem [resolvable:$true] %s64
      %70 = dma.hbm_to_vmem [thread:$0]  %s63, 2048, %s65, [#allocation9], 128, 128, 8
    $region21: #{tpu_custom_call.1} parent=1 // pred_fallthru
      _
    // Predicated region
    $region22: #{tpu_custom_call.1} parent=1 // pred_check
      _
    $region23: #{tpu_custom_call.1} parent=1 // pred_check_branch
      %72 = sbr.rel (0) target = $region25
    $region24: #{tpu_custom_call.1} parent=1 // pred_region
      _
    $region25: #{tpu_custom_call.1} parent=1 // pred_fallthru
      _
    // Predicated region
    $region26: #{tpu_custom_call.1} parent=1 // pred_check
      _
    $region27: #{tpu_custom_call.1} parent=1 // pred_check_branch
      %74 = sbr.rel (0) target = $region29
    $region28: #{tpu_custom_call.1} parent=1 // pred_region
      _
    $region29: #{tpu_custom_call.1} parent=1 // pred_fallthru
      _
    // Predicated region
    $region30: #{tpu_custom_call.1} parent=1 // pred_check
      _
    $region31: #{tpu_custom_call.1} parent=1 // pred_check_branch
      %76 = sbr.rel (0) target = $region33
    $region32: #{tpu_custom_call.1} parent=1 // pred_region
      _
    $region33: #{tpu_custom_call.1} parent=1 // pred_fallthru
      _
    // Predicated region
    $region34: #{tpu_custom_call.1} parent=1 // pred_check
      _
    $region35: #{tpu_custom_call.1} parent=1 // pred_check_branch
      %78 = sbr.rel (0) target = $region37
    $region36: #{tpu_custom_call.1} parent=1 // pred_region
      %80 = dma.done [#allocation3], 1024
    $region37: #{tpu_custom_call.1} parent=1 // pred_fallthru
      _
    // Predicated region
    $region38: #{tpu_custom_call.1} parent=1 // pred_check
      _
    $region39: #{tpu_custom_call.1} parent=1 // pred_check_branch
      %82 = sbr.rel (0) target = $region41
    $region40: #{tpu_custom_call.1} parent=1 // pred_region
      %84 = dma.done [#allocation6], 2048
    $region41: #{tpu_custom_call.1} parent=1 // pred_fallthru
      _
    // Predicated region
    $region42: #{tpu_custom_call.1} parent=1 // pred_check
      _
    $region43: #{tpu_custom_call.1} parent=1 // pred_check_branch
      %86 = sbr.rel (0) target = $region45
    $region44: #{tpu_custom_call.1} parent=1 // pred_region
      %88 = dma.done [#allocation6], 2048
    $region45: #{tpu_custom_call.1} parent=1 // pred_fallthru
      _
    // Predicated region
    $region46: #{tpu_custom_call.1} parent=1 // pred_check
      _
    $region47: #{tpu_custom_call.1} parent=1 // pred_check_branch
      %90 = sbr.rel (0) target = $region49
    $region48: #{tpu_custom_call.1} parent=1 // pred_region
      %92 = dma.done [#allocation9], 2048
    $region49: #{tpu_custom_call.1} parent=1 // pred_fallthru
      _
    %v93 = vld [vmem:[#allocation5] sm:$0xff]
    %v94 = vld [vmem:[#allocation5 + $0x8] sm:$0xff]
    %v95 = vld [vmem:[#allocation5 + $0x10] sm:$0xff]
    %v96 = vld [vmem:[#allocation5 + $0x18] sm:$0xff]
    %v97 = vld [vmem:[#allocation5 + $0x20] sm:$0xff]
    %v98 = vld [vmem:[#allocation5 + $0x28] sm:$0xff]
    %v99 = vld [vmem:[#allocation5 + $0x30] sm:$0xff]
    %v100 = vld [vmem:[#allocation5 + $0x38] sm:$0xff]
    %v101 = vld [vmem:[#allocation5 + $0x40] sm:$0xff]
    %v102 = vld [vmem:[#allocation5 + $0x48] sm:$0xff]
    %v103 = vld [vmem:[#allocation5 + $0x50] sm:$0xff]
    %v104 = vld [vmem:[#allocation5 + $0x58] sm:$0xff]
    %v105 = vld [vmem:[#allocation5 + $0x60] sm:$0xff]
    %v106 = vld [vmem:[#allocation5 + $0x68] sm:$0xff]
    %v107 = vld [vmem:[#allocation5 + $0x70] sm:$0xff]
    %v108 = vld [vmem:[#allocation5 + $0x78] sm:$0xff]
    %v109 = vld [vmem:[#allocation2] sm:$0xf]
    %v110 = vld [vmem:[#allocation2 + $0x4] sm:$0xf]
    %v111 = vld [vmem:[#allocation2 + $0x8] sm:$0xf]
    %v112 = vld [vmem:[#allocation2 + $0xc] sm:$0xf]
    %v113 = vld [vmem:[#allocation2 + $0x10] sm:$0xf]
    %v114 = vld [vmem:[#allocation2 + $0x14] sm:$0xf]
    %v115 = vld [vmem:[#allocation2 + $0x18] sm:$0xf]
    %v116 = vld [vmem:[#allocation2 + $0x1c] sm:$0xf]
    %v117 = vld [vmem:[#allocation2 + $0x20] sm:$0xf]
    %v118 = vld [vmem:[#allocation2 + $0x24] sm:$0xf]
    %v119 = vld [vmem:[#allocation2 + $0x28] sm:$0xf]
    %v120 = vld [vmem:[#allocation2 + $0x2c] sm:$0xf]
    %v121 = vld [vmem:[#allocation2 + $0x30] sm:$0xf]
    %v122 = vld [vmem:[#allocation2 + $0x34] sm:$0xf]
    %v123 = vld [vmem:[#allocation2 + $0x38] sm:$0xf]
    %v124 = vld [vmem:[#allocation2 + $0x3c] sm:$0xf]
    %v125 = vpack.c.bf16 %v94, %v93
    %v126 = vpack.c.bf16 %v96, %v95
    %v127 = vpack.c.bf16 %v98, %v97
    %v128 = vpack.c.bf16 %v100, %v99
    %v129 = vpack.c.bf16 %v102, %v101
    %v130 = vpack.c.bf16 %v104, %v103
    %v131 = vpack.c.bf16 %v106, %v105
    %v132 = vpack.c.bf16 %v108, %v107
    %v149 = vunpack.c.l.b16 %v109
    %v150 = vunpack.c.l.b16 %v110
    %v151 = vunpack.c.l.b16 %v111
    %v152 = vunpack.c.l.b16 %v112
    %v153 = vunpack.c.l.b16 %v113
    %v154 = vunpack.c.l.b16 %v114
    %v155 = vunpack.c.l.b16 %v115
    %v156 = vunpack.c.l.b16 %v116
    %v157 = vunpack.c.l.b16 %v117
    %v158 = vunpack.c.l.b16 %v118
    %v159 = vunpack.c.l.b16 %v119
    %v160 = vunpack.c.l.b16 %v120
    %v161 = vunpack.c.l.b16 %v121
    %v162 = vunpack.c.l.b16 %v122
    %v163 = vunpack.c.l.b16 %v123
    %v164 = vunpack.c.l.b16 %v124
    %v165 = vpack.c.b16 %v150, %v149
    %v166 = vpack.c.b16 %v152, %v151
    %v167 = vpack.c.b16 %v154, %v153
    %v168 = vpack.c.b16 %v156, %v155
    %v169 = vpack.c.b16 %v158, %v157
    %v170 = vpack.c.b16 %v160, %v159
    %v171 = vpack.c.b16 %v162, %v161
    %v172 = vpack.c.b16 %v164, %v163
    %181 = vmatpush.bf16.msra.mxu0 %v132
    %182 = vmatpush.bf16.msra.mxu0 %v131
    %183 = vmatpush.bf16.msra.mxu0 %v130
    %184 = vmatpush.bf16.msra.mxu0 %v129
    %185 = vmatpush.bf16.msra.mxu0 %v128
    %186 = vmatpush.bf16.msra.mxu0 %v127
    %187 = vmatpush.bf16.msra.mxu0 %v126
    %188 = vmatpush.bf16.msra.mxu0 %v125
    %189 = vmatmul.bf16.gmra.mxu0 %v165
    %v190 = vpop.f32.mrf.mxu0
    %v191 = vadd.f32 0.0, %v190
    %v192 = vpop.f32.mrf.mxu0
    %v193 = vadd.f32 0.0, %v192
    %194 = vmatmul.bf16.gmra.mxu0 %v166
    %v195 = vpop.f32.mrf.mxu0
    %v196 = vadd.f32 0.0, %v195
    %v197 = vpop.f32.mrf.mxu0
    %v198 = vadd.f32 0.0, %v197
    %199 = vmatmul.bf16.gmra.mxu0 %v167
    %v200 = vpop.f32.mrf.mxu0
    %v201 = vadd.f32 0.0, %v200
    %v202 = vpop.f32.mrf.mxu0
    %v203 = vadd.f32 0.0, %v202
    %204 = vmatmul.bf16.gmra.mxu0 %v168
    %v205 = vpop.f32.mrf.mxu0
    %v206 = vadd.f32 0.0, %v205
    %v207 = vpop.f32.mrf.mxu0
    %v208 = vadd.f32 0.0, %v207
    %209 = vmatmul.bf16.gmra.mxu0 %v169
    %v210 = vpop.f32.mrf.mxu0
    %v211 = vadd.f32 0.0, %v210
    %v212 = vpop.f32.mrf.mxu0
    %v213 = vadd.f32 0.0, %v212
    %214 = vmatmul.bf16.gmra.mxu0 %v170
    %v215 = vpop.f32.mrf.mxu0
    %v216 = vadd.f32 0.0, %v215
    %v217 = vpop.f32.mrf.mxu0
    %v218 = vadd.f32 0.0, %v217
    %219 = vmatmul.bf16.gmra.mxu0 %v171
    %v220 = vpop.f32.mrf.mxu0
    %v221 = vadd.f32 0.0, %v220
    %v222 = vpop.f32.mrf.mxu0
    %v223 = vadd.f32 0.0, %v222
    %224 = vmatmul.bf16.gmra.mxu0 %v172
    %v225 = vpop.f32.mrf.mxu0
    %v226 = vadd.f32 0.0, %v225
    %v227 = vpop.f32.mrf.mxu0
    %v228 = vadd.f32 0.0, %v227
    %229 = vdwg.mxu0
    %v230 = vadd.f32 %v93, %v191
    %v231 = vadd.f32 %v94, %v193
    %v232 = vadd.f32 %v95, %v196
    %v233 = vadd.f32 %v96, %v198
    %v234 = vadd.f32 %v97, %v201
    %v235 = vadd.f32 %v98, %v203
    %v236 = vadd.f32 %v99, %v206
    %v237 = vadd.f32 %v100, %v208
    %v238 = vadd.f32 %v101, %v211
    %v239 = vadd.f32 %v102, %v213
    %v240 = vadd.f32 %v103, %v216
    %v241 = vadd.f32 %v104, %v218
    %v242 = vadd.f32 %v105, %v221
    %v243 = vadd.f32 %v106, %v223
    %v244 = vadd.f32 %v107, %v226
    %v245 = vadd.f32 %v108, %v228
    %v246 = vld [vmem:[#allocation7] sm:$0xff]
    %v247 = vld [vmem:[#allocation7 + $0x8] sm:$0xff]
    %v248 = vld [vmem:[#allocation7 + $0x10] sm:$0xff]
    %v249 = vld [vmem:[#allocation7 + $0x18] sm:$0xff]
    %v250 = vld [vmem:[#allocation7 + $0x20] sm:$0xff]
    %v251 = vld [vmem:[#allocation7 + $0x28] sm:$0xff]
    %v252 = vld [vmem:[#allocation7 + $0x30] sm:$0xff]
    %v253 = vld [vmem:[#allocation7 + $0x38] sm:$0xff]
    %v254 = vld [vmem:[#allocation7 + $0x40] sm:$0xff]
    %v255 = vld [vmem:[#allocation7 + $0x48] sm:$0xff]
    %v256 = vld [vmem:[#allocation7 + $0x50] sm:$0xff]
    %v257 = vld [vmem:[#allocation7 + $0x58] sm:$0xff]
    %v258 = vld [vmem:[#allocation7 + $0x60] sm:$0xff]
    %v259 = vld [vmem:[#allocation7 + $0x68] sm:$0xff]
    %v260 = vld [vmem:[#allocation7 + $0x70] sm:$0xff]
    %v261 = vld [vmem:[#allocation7 + $0x78] sm:$0xff]
    %v262 = vld [vmem:[%s3] sm:$0x1]
    %v264 = vperm.slane %v262, 0
    %266 = vmatpush.msra.mxu0 %v261
    %267 = vmatpush.msra.mxu0 %v260
    %268 = vmatpush.msra.mxu0 %v259
    %269 = vmatpush.msra.mxu0 %v258
    %270 = vmatpush.msra.mxu0 %v257
    %271 = vmatpush.msra.mxu0 %v256
    %272 = vmatpush.msra.mxu0 %v255
    %273 = vmatpush.msra.mxu0 %v254
    %274 = vmatpush.msra.mxu0 %v253
    %275 = vmatpush.msra.mxu0 %v252
    %276 = vmatpush.msra.mxu0 %v251
    %277 = vmatpush.msra.mxu0 %v250
    %278 = vmatpush.msra.mxu0 %v249
    %279 = vmatpush.msra.mxu0 %v248
    %280 = vmatpush.msra.mxu0 %v247
    %281 = vmatpush.msra.mxu0 %v246
    %282 = vmatmul.f32.gmra.mxu0 %v230
    %v283 = vpop.f32.mrf.mxu0
    %v284 = vadd.f32 %v264, %v283
    %285 = vmatmul.f32.gmra.mxu0 %v231
    %v286 = vpop.f32.mrf.mxu0
    %v287 = vadd.f32 %v264, %v286
    %288 = vmatmul.f32.gmra.mxu0 %v232
    %v289 = vpop.f32.mrf.mxu0
    %v290 = vadd.f32 %v264, %v289
    %291 = vmatmul.f32.gmra.mxu0 %v233
    %v292 = vpop.f32.mrf.mxu0
    %v293 = vadd.f32 %v264, %v292
    %294 = vmatmul.f32.gmra.mxu0 %v234
    %v295 = vpop.f32.mrf.mxu0
    %v296 = vadd.f32 %v264, %v295
    %297 = vmatmul.f32.gmra.mxu0 %v235
    %v298 = vpop.f32.mrf.mxu0
    %v299 = vadd.f32 %v264, %v298
    %300 = vmatmul.f32.gmra.mxu0 %v236
    %v301 = vpop.f32.mrf.mxu0
    %v302 = vadd.f32 %v264, %v301
    %303 = vmatmul.f32.gmra.mxu0 %v237
    %v304 = vpop.f32.mrf.mxu0
    %v305 = vadd.f32 %v264, %v304
    %306 = vmatmul.f32.gmra.mxu0 %v238
    %v307 = vpop.f32.mrf.mxu0
    %v308 = vadd.f32 %v264, %v307
    %309 = vmatmul.f32.gmra.mxu0 %v239
    %v310 = vpop.f32.mrf.mxu0
    %v311 = vadd.f32 %v264, %v310
    %312 = vmatmul.f32.gmra.mxu0 %v240
    %v313 = vpop.f32.mrf.mxu0
    %v314 = vadd.f32 %v264, %v313
    %315 = vmatmul.f32.gmra.mxu0 %v241
    %v316 = vpop.f32.mrf.mxu0
    %v317 = vadd.f32 %v264, %v316
    %318 = vmatmul.f32.gmra.mxu0 %v242
    %v319 = vpop.f32.mrf.mxu0
    %v320 = vadd.f32 %v264, %v319
    %321 = vmatmul.f32.gmra.mxu0 %v243
    %v322 = vpop.f32.mrf.mxu0
    %v323 = vadd.f32 %v264, %v322
    %324 = vmatmul.f32.gmra.mxu0 %v244
    %v325 = vpop.f32.mrf.mxu0
    %v326 = vadd.f32 %v264, %v325
    %327 = vmatmul.f32.gmra.mxu0 %v245
    %v328 = vpop.f32.mrf.mxu0
    %v329 = vadd.f32 %v264, %v328
    %330 = vdwg.mxu0
    %v331 = vmax.f32 %v284, 0.0
    %v332 = vmax.f32 %v287, 0.0
    %v333 = vmax.f32 %v290, 0.0
    %v334 = vmax.f32 %v293, 0.0
    %v335 = vmax.f32 %v296, 0.0
    %v336 = vmax.f32 %v299, 0.0
    %v337 = vmax.f32 %v302, 0.0
    %v338 = vmax.f32 %v305, 0.0
    %v339 = vmax.f32 %v308, 0.0
    %v340 = vmax.f32 %v311, 0.0
    %v341 = vmax.f32 %v314, 0.0
    %v342 = vmax.f32 %v317, 0.0
    %v343 = vmax.f32 %v320, 0.0
    %v344 = vmax.f32 %v323, 0.0
    %v345 = vmax.f32 %v326, 0.0
    %v346 = vmax.f32 %v329, 0.0
    %v347 = vld [vmem:[#allocation8] sm:$0xff]
    %v348 = vld [vmem:[#allocation8 + $0x8] sm:$0xff]
    %v349 = vld [vmem:[#allocation8 + $0x10] sm:$0xff]
    %v350 = vld [vmem:[#allocation8 + $0x18] sm:$0xff]
    %v351 = vld [vmem:[#allocation8 + $0x20] sm:$0xff]
    %v352 = vld [vmem:[#allocation8 + $0x28] sm:$0xff]
    %v353 = vld [vmem:[#allocation8 + $0x30] sm:$0xff]
    %v354 = vld [vmem:[#allocation8 + $0x38] sm:$0xff]
    %v355 = vld [vmem:[#allocation8 + $0x40] sm:$0xff]
    %v356 = vld [vmem:[#allocation8 + $0x48] sm:$0xff]
    %v357 = vld [vmem:[#allocation8 + $0x50] sm:$0xff]
    %v358 = vld [vmem:[#allocation8 + $0x58] sm:$0xff]
    %v359 = vld [vmem:[#allocation8 + $0x60] sm:$0xff]
    %v360 = vld [vmem:[#allocation8 + $0x68] sm:$0xff]
    %v361 = vld [vmem:[#allocation8 + $0x70] sm:$0xff]
    %v362 = vld [vmem:[#allocation8 + $0x78] sm:$0xff]
    %v363 = vld [vmem:[%s5] sm:$0x1]
    %v365 = vperm.slane %v363, 0
    %367 = vmatpush.msra.mxu0 %v362
    %368 = vmatpush.msra.mxu0 %v361
    %369 = vmatpush.msra.mxu0 %v360
    %370 = vmatpush.msra.mxu0 %v359
    %371 = vmatpush.msra.mxu0 %v358
    %372 = vmatpush.msra.mxu0 %v357
    %373 = vmatpush.msra.mxu0 %v356
    %374 = vmatpush.msra.mxu0 %v355
    %375 = vmatpush.msra.mxu0 %v354
    %376 = vmatpush.msra.mxu0 %v353
    %377 = vmatpush.msra.mxu0 %v352
    %378 = vmatpush.msra.mxu0 %v351
    %379 = vmatpush.msra.mxu0 %v350
    %380 = vmatpush.msra.mxu0 %v349
    %381 = vmatpush.msra.mxu0 %v348
    %382 = vmatpush.msra.mxu0 %v347
    %383 = vmatmul.f32.gmra.mxu0 %v331
    %v384 = vpop.f32.mrf.mxu0
    %v385 = vadd.f32 %v365, %v384
    %386 = vmatmul.f32.gmra.mxu0 %v332
    %v387 = vpop.f32.mrf.mxu0
    %v388 = vadd.f32 %v365, %v387
    %389 = vmatmul.f32.gmra.mxu0 %v333
    %v390 = vpop.f32.mrf.mxu0
    %v391 = vadd.f32 %v365, %v390
    %392 = vmatmul.f32.gmra.mxu0 %v334
    %v393 = vpop.f32.mrf.mxu0
    %v394 = vadd.f32 %v365, %v393
    %395 = vmatmul.f32.gmra.mxu0 %v335
    %v396 = vpop.f32.mrf.mxu0
    %v397 = vadd.f32 %v365, %v396
    %398 = vmatmul.f32.gmra.mxu0 %v336
    %v399 = vpop.f32.mrf.mxu0
    %v400 = vadd.f32 %v365, %v399
    %401 = vmatmul.f32.gmra.mxu0 %v337
    %v402 = vpop.f32.mrf.mxu0
    %v403 = vadd.f32 %v365, %v402
    %404 = vmatmul.f32.gmra.mxu0 %v338
    %v405 = vpop.f32.mrf.mxu0
    %v406 = vadd.f32 %v365, %v405
    %407 = vmatmul.f32.gmra.mxu0 %v339
    %v408 = vpop.f32.mrf.mxu0
    %v409 = vadd.f32 %v365, %v408
    %410 = vmatmul.f32.gmra.mxu0 %v340
    %v411 = vpop.f32.mrf.mxu0
    %v412 = vadd.f32 %v365, %v411
    %413 = vmatmul.f32.gmra.mxu0 %v341
    %v414 = vpop.f32.mrf.mxu0
    %v415 = vadd.f32 %v365, %v414
    %416 = vmatmul.f32.gmra.mxu0 %v342
    %v417 = vpop.f32.mrf.mxu0
    %v418 = vadd.f32 %v365, %v417
    %419 = vmatmul.f32.gmra.mxu0 %v343
    %v420 = vpop.f32.mrf.mxu0
    %v421 = vadd.f32 %v365, %v420
    %422 = vmatmul.f32.gmra.mxu0 %v344
    %v423 = vpop.f32.mrf.mxu0
    %v424 = vadd.f32 %v365, %v423
    %425 = vmatmul.f32.gmra.mxu0 %v345
    %v426 = vpop.f32.mrf.mxu0
    %v427 = vadd.f32 %v365, %v426
    %428 = vmatmul.f32.gmra.mxu0 %v346
    %v429 = vpop.f32.mrf.mxu0
    %v430 = vadd.f32 %v365, %v429
    %431 = vdwg.mxu0
    %v432 = vmax.f32 %v385, 0.0
    %v433 = vmax.f32 %v388, 0.0
    %v434 = vmax.f32 %v391, 0.0
    %v435 = vmax.f32 %v394, 0.0
    %v436 = vmax.f32 %v397, 0.0
    %v437 = vmax.f32 %v400, 0.0
    %v438 = vmax.f32 %v403, 0.0
    %v439 = vmax.f32 %v406, 0.0
    %v440 = vmax.f32 %v409, 0.0
    %v441 = vmax.f32 %v412, 0.0
    %v442 = vmax.f32 %v415, 0.0
    %v443 = vmax.f32 %v418, 0.0
    %v444 = vmax.f32 %v421, 0.0
    %v445 = vmax.f32 %v424, 0.0
    %v446 = vmax.f32 %v427, 0.0
    %v447 = vmax.f32 %v430, 0.0
    %v448 = vlaneseq
    %v449 = vshrl.u32 %v448, 7
    %v450 = vadd.s32 %v449, 8
    %v451 = vadd.s32 %v449, 16
    %v452 = vadd.s32 %v449, 24
    %v453 = vadd.s32 %v449, 32
    %v454 = vadd.s32 %v449, 40
    %v455 = vadd.s32 %v449, 48
    %v456 = vadd.s32 %v449, 56
    %v457 = vadd.s32 %v449, 64
    %v458 = vadd.s32 %v449, 72
    %v459 = vadd.s32 %v449, 80
    %v460 = vadd.s32 %v449, 88
    %v461 = vadd.s32 %v449, 96
    %v462 = vadd.s32 %v449, 104
    %v463 = vadd.s32 %v449, 112
    %v464 = vadd.s32 %v449, 120
    %vm465 = vcmp.lt.s32.totalorder %v449, 4
    %vm466 = vcmp.lt.s32.totalorder %v450, 4
    %vm467 = vcmp.lt.s32.totalorder %v451, 4
    %vm468 = vcmp.lt.s32.totalorder %v452, 4
    %vm469 = vcmp.lt.s32.totalorder %v453, 4
    %vm470 = vcmp.lt.s32.totalorder %v454, 4
    %vm471 = vcmp.lt.s32.totalorder %v455, 4
    %vm472 = vcmp.lt.s32.totalorder %v456, 4
    %vm473 = vcmp.lt.s32.totalorder %v457, 4
    %vm474 = vcmp.lt.s32.totalorder %v458, 4
    %vm475 = vcmp.lt.s32.totalorder %v459, 4
    %vm476 = vcmp.lt.s32.totalorder %v460, 4
    %vm477 = vcmp.lt.s32.totalorder %v461, 4
    %vm478 = vcmp.lt.s32.totalorder %v462, 4
    %vm479 = vcmp.lt.s32.totalorder %v463, 4
    %vm480 = vcmp.lt.s32.totalorder %v464, 4
    %v481 = vsel %vm465, 1, 0
    %v482 = vsel %vm466, 1, 0
    %v483 = vsel %vm467, 1, 0
    %v484 = vsel %vm468, 1, 0
    %v485 = vsel %vm469, 1, 0
    %v486 = vsel %vm470, 1, 0
    %v487 = vsel %vm471, 1, 0
    %v488 = vsel %vm472, 1, 0
    %v489 = vsel %vm473, 1, 0
    %v490 = vsel %vm474, 1, 0
    %v491 = vsel %vm475, 1, 0
    %v492 = vsel %vm476, 1, 0
    %v493 = vsel %vm477, 1, 0
    %v494 = vsel %vm478, 1, 0
    %v495 = vsel %vm479, 1, 0
    %v496 = vsel %vm480, 1, 0
    %v497 = vcvt.s32.f32 %v481
    %v498 = vcvt.s32.f32 %v482
    %v499 = vcvt.s32.f32 %v483
    %v500 = vcvt.s32.f32 %v484
    %v501 = vcvt.s32.f32 %v485
    %v502 = vcvt.s32.f32 %v486
    %v503 = vcvt.s32.f32 %v487
    %v504 = vcvt.s32.f32 %v488
    %v505 = vcvt.s32.f32 %v489
    %v506 = vcvt.s32.f32 %v490
    %v507 = vcvt.s32.f32 %v491
    %v508 = vcvt.s32.f32 %v492
    %v509 = vcvt.s32.f32 %v493
    %v510 = vcvt.s32.f32 %v494
    %v511 = vcvt.s32.f32 %v495
    %v512 = vcvt.s32.f32 %v496
    %v513 = vmul.f32 %v432, %v497
    %v514 = vmul.f32 %v433, %v498
    %v515 = vmul.f32 %v434, %v499
    %v516 = vmul.f32 %v435, %v500
    %v517 = vmul.f32 %v436, %v501
    %v518 = vmul.f32 %v437, %v502
    %v519 = vmul.f32 %v438, %v503
    %v520 = vmul.f32 %v439, %v504
    %v521 = vmul.f32 %v440, %v505
    %v522 = vmul.f32 %v441, %v506
    %v523 = vmul.f32 %v442, %v507
    %v524 = vmul.f32 %v443, %v508
    %v525 = vmul.f32 %v444, %v509
    %v526 = vmul.f32 %v445, %v510
    %v527 = vmul.f32 %v446, %v511
    %v528 = vmul.f32 %v447, %v512
    %v529 = vadd.f32 %v513, %v514
    %v530 = vadd.f32 %v529, %v515
    %v531 = vadd.f32 %v530, %v516
    %v532 = vadd.f32 %v531, %v517
    %v533 = vadd.f32 %v532, %v518
    %v534 = vadd.f32 %v533, %v519
    %v535 = vadd.f32 %v534, %v520
    %v536 = vadd.f32 %v535, %v521
    %v537 = vadd.f32 %v536, %v522
    %v538 = vadd.f32 %v537, %v523
    %v539 = vadd.f32 %v538, %v524
    %v540 = vadd.f32 %v539, %v525
    %v541 = vadd.f32 %v540, %v526
    %v542 = vadd.f32 %v541, %v527
    %v543 = vadd.f32 %v542, %v528
    %v544 = vrot.slane %v543, 4
    %v545 = vadd.f32 %v543, %v544
    %v546 = vrot.slane %v545, 2
    %v547 = vadd.f32 %v545, %v546
    %v548 = vrot.slane %v547, 1
    %v549 = vadd.f32 %v547, %v548
    %v550 = vmul.f32 %v549, 0.25
    %v551 = vsub.f32 %v432, %v550
    %v552 = vsub.f32 %v433, %v550
    %v553 = vsub.f32 %v434, %v550
    %v554 = vsub.f32 %v435, %v550
    %v555 = vsub.f32 %v436, %v550
    %v556 = vsub.f32 %v437, %v550
    %v557 = vsub.f32 %v438, %v550
    %v558 = vsub.f32 %v439, %v550
    %v559 = vsub.f32 %v440, %v550
    %v560 = vsub.f32 %v441, %v550
    %v561 = vsub.f32 %v442, %v550
    %v562 = vsub.f32 %v443, %v550
    %v563 = vsub.f32 %v444, %v550
    %v564 = vsub.f32 %v445, %v550
    %v565 = vsub.f32 %v446, %v550
    %v566 = vsub.f32 %v447, %v550
    %v567 = vmul.f32 %v551, %v497
    %v568 = vmul.f32 %v552, %v498
    %v569 = vmul.f32 %v553, %v499
    %v570 = vmul.f32 %v554, %v500
    %v571 = vmul.f32 %v555, %v501
    %v572 = vmul.f32 %v556, %v502
    %v573 = vmul.f32 %v557, %v503
    %v574 = vmul.f32 %v558, %v504
    %v575 = vmul.f32 %v559, %v505
    %v576 = vmul.f32 %v560, %v506
    %v577 = vmul.f32 %v561, %v507
    %v578 = vmul.f32 %v562, %v508
    %v579 = vmul.f32 %v563, %v509
    %v580 = vmul.f32 %v564, %v510
    %v581 = vmul.f32 %v565, %v511
    %v582 = vmul.f32 %v566, %v512
    %v583 = vmul.f32 %v567, %v567
    %v584 = vmul.f32 %v568, %v568
    %v585 = vmul.f32 %v569, %v569
    %v586 = vmul.f32 %v570, %v570
    %v587 = vmul.f32 %v571, %v571
    %v588 = vmul.f32 %v572, %v572
    %v589 = vmul.f32 %v573, %v573
    %v590 = vmul.f32 %v574, %v574
    %v591 = vmul.f32 %v575, %v575
    %v592 = vmul.f32 %v576, %v576
    %v593 = vmul.f32 %v577, %v577
    %v594 = vmul.f32 %v578, %v578
    %v595 = vmul.f32 %v579, %v579
    %v596 = vmul.f32 %v580, %v580
    %v597 = vmul.f32 %v581, %v581
    %v598 = vmul.f32 %v582, %v582
    %v599 = vadd.f32 %v583, %v584
    %v600 = vadd.f32 %v599, %v585
    %v601 = vadd.f32 %v600, %v586
    %v602 = vadd.f32 %v601, %v587
    %v603 = vadd.f32 %v602, %v588
    %v604 = vadd.f32 %v603, %v589
    %v605 = vadd.f32 %v604, %v590
    %v606 = vadd.f32 %v605, %v591
    %v607 = vadd.f32 %v606, %v592
    %v608 = vadd.f32 %v607, %v593
    %v609 = vadd.f32 %v608, %v594
    %v610 = vadd.f32 %v609, %v595
    %v611 = vadd.f32 %v610, %v596
    %v612 = vadd.f32 %v611, %v597
    %v613 = vadd.f32 %v612, %v598
    %v614 = vrot.slane %v613, 4
    %v615 = vadd.f32 %v613, %v614
    %v616 = vrot.slane %v615, 2
    %v617 = vadd.f32 %v615, %v616
    %v618 = vrot.slane %v617, 1
    %v619 = vadd.f32 %v617, %v618
    %v620 = vmul.f32 %v619, 0.25
    %v621 = vadd.f32 %v620, 1e-05
    %v622 = vrsqrt.pop %v621
    %v623 = vmul.f32 %v622, %v621
    %v624 = vmul.f32 %v623, %v622
    %v625 = vmul.f32 0.5, %v624
    %v626 = vsub.f32 1.5, %v625
    %v627 = vmul.f32 %v622, %v626
    %vm628 = vweird.f32 %v621
    %vm629 = vweird.f32 %v622
    %vm630 = vmor %vm628, %vm629
    %v631 = vsel %vm630, %v622, %v627
    %v632 = vmul.f32 %v551, %v631
    %v633 = vmul.f32 %v552, %v631
    %v634 = vmul.f32 %v553, %v631
    %v635 = vmul.f32 %v554, %v631
    %v636 = vmul.f32 %v555, %v631
    %v637 = vmul.f32 %v556, %v631
    %v638 = vmul.f32 %v557, %v631
    %v639 = vmul.f32 %v558, %v631
    %v640 = vmul.f32 %v559, %v631
    %v641 = vmul.f32 %v560, %v631
    %v642 = vmul.f32 %v561, %v631
    %v643 = vmul.f32 %v562, %v631
    %v644 = vmul.f32 %v563, %v631
    %v645 = vmul.f32 %v564, %v631
    %v646 = vmul.f32 %v565, %v631
    %v647 = vmul.f32 %v566, %v631
    %v648 = vld [vmem:[%s6] sm:$0x1]
    %v650 = vperm.slane %v648, 0
    %v652 = vmul.f32 %v632, %v650
    %v653 = vmul.f32 %v633, %v650
    %v654 = vmul.f32 %v634, %v650
    %v655 = vmul.f32 %v635, %v650
    %v656 = vmul.f32 %v636, %v650
    %v657 = vmul.f32 %v637, %v650
    %v658 = vmul.f32 %v638, %v650
    %v659 = vmul.f32 %v639, %v650
    %v660 = vmul.f32 %v640, %v650
    %v661 = vmul.f32 %v641, %v650
    %v662 = vmul.f32 %v642, %v650
    %v663 = vmul.f32 %v643, %v650
    %v664 = vmul.f32 %v644, %v650
    %v665 = vmul.f32 %v645, %v650
    %v666 = vmul.f32 %v646, %v650
    %v667 = vmul.f32 %v647, %v650
    %v668 = vld [vmem:[%s7] sm:$0x1]
    %v670 = vperm.slane %v668, 0
    %v672 = vadd.f32 %v652, %v670
    %v673 = vadd.f32 %v653, %v670
    %v674 = vadd.f32 %v654, %v670
    %v675 = vadd.f32 %v655, %v670
    %v676 = vadd.f32 %v656, %v670
    %v677 = vadd.f32 %v657, %v670
    %v678 = vadd.f32 %v658, %v670
    %v679 = vadd.f32 %v659, %v670
    %v680 = vadd.f32 %v660, %v670
    %v681 = vadd.f32 %v661, %v670
    %v682 = vadd.f32 %v662, %v670
    %v683 = vadd.f32 %v663, %v670
    %v684 = vadd.f32 %v664, %v670
    %v685 = vadd.f32 %v665, %v670
    %v686 = vadd.f32 %v666, %v670
    %v687 = vadd.f32 %v667, %v670
    %688 = vst [vmem:[#allocation10] sm:$0xff] %v672
    %689 = vst [vmem:[#allocation10 + $0x8] sm:$0xff] %v673
    %690 = vst [vmem:[#allocation10 + $0x10] sm:$0xff] %v674
    %691 = vst [vmem:[#allocation10 + $0x18] sm:$0xff] %v675
    %692 = vst [vmem:[#allocation10 + $0x20] sm:$0xff] %v676
    %693 = vst [vmem:[#allocation10 + $0x28] sm:$0xff] %v677
    %694 = vst [vmem:[#allocation10 + $0x30] sm:$0xff] %v678
    %695 = vst [vmem:[#allocation10 + $0x38] sm:$0xff] %v679
    %696 = vst [vmem:[#allocation10 + $0x40] sm:$0xff] %v680
    %697 = vst [vmem:[#allocation10 + $0x48] sm:$0xff] %v681
    %698 = vst [vmem:[#allocation10 + $0x50] sm:$0xff] %v682
    %699 = vst [vmem:[#allocation10 + $0x58] sm:$0xff] %v683
    %700 = vst [vmem:[#allocation10 + $0x60] sm:$0xff] %v684
    %701 = vst [vmem:[#allocation10 + $0x68] sm:$0xff] %v685
    %702 = vst [vmem:[#allocation10 + $0x70] sm:$0xff] %v686
    %703 = vst [vmem:[#allocation10 + $0x78] sm:$0xff] %v687
    // Predicated region
    $region50: #{tpu_custom_call.1} parent=1 // pred_check
      _
    $region51: #{tpu_custom_call.1} parent=1 // pred_check_branch
      %705 = sbr.rel (0) target = $region53
    $region52: #{tpu_custom_call.1} parent=1 // pred_region
      %707 = vsyncadd [#allocation4], 0
      %s708 = sshll.u32 [#allocation10], 4
      %s709 = int_to_ptr.vmem [resolvable:$true] %s708
      %s710 = sshll.u32 %s8, 4
      %s711 = int_to_ptr.hbm [resolvable:$true] %s710
      %716 = dma.vmem_to_hbm [thread:$0]  %s709, 2048, %s711, [#allocation4], 128, 128, 8
    $region53: #{tpu_custom_call.1} parent=1 // pred_fallthru
      _
    // Predicated region
    $region54: #{tpu_custom_call.1} parent=1 // pred_check
      _
    $region55: #{tpu_custom_call.1} parent=1 // pred_check_branch
      %718 = sbr.rel (0) target = $region57
    $region56: #{tpu_custom_call.1} parent=1 // pred_region
      %720 = dma.done [#allocation4], 2048
    $region57: #{tpu_custom_call.1} parent=1 // pred_fallthru
      _
    %721 = vsyncpa [#allocation3], 1
    %722 = vsyncpa [#allocation6], 1
    %723 = vsyncpa [#allocation9], 1
    %724 = vsyncpa [#allocation4], 1

</llo_original>
